<compile_context>
chip_gen: v6e
topology: v6e:2x2x1
jax: 0.10.0
libtpu: 0.0.40
codegen_flags: <defaults>
</compile_context>

<pallas_src>
import functools

import jax
import jax.numpy as jnp
from jax.experimental import pallas as pl
from jax.experimental.pallas import tpu as pltpu


def mlp_softmax_kernel(x_ref, w1_ref, b1_ref, w2_ref, b2_ref,
                       w3_ref, b3_ref, w4d_ref, b4d_ref, o_ref, *, mxu_dtype):
    # x_ref: [8, TB] f32 (features padded 2->8 on sublanes, batch on lanes)
    x = x_ref[...].astype(mxu_dtype)

    # Layer 1 on the MXU: [128,8] @ [8,TB]
    h = jnp.dot(w1_ref[...], x, preferred_element_type=jnp.float32) + b1_ref[...]
    h = jnp.maximum(h, 0.0)                                   # [128, TB] f32

    # Layer 2: [64,128] @ [128,TB]
    h = jnp.dot(w2_ref[...], h.astype(mxu_dtype),
                preferred_element_type=jnp.float32) + b2_ref[...]
    h = jnp.maximum(h, 0.0)                                   # [64, TB]

    # Layer 3: [16,64] @ [64,TB]
    h = jnp.dot(w3_ref[...], h.astype(mxu_dtype),
                preferred_element_type=jnp.float32) + b3_ref[...]
    h = jnp.maximum(h, 0.0)                                   # [16, TB]

    # Layer 4 folded to the logit difference: [1,16] @ [16,TB]
    d = jnp.dot(w4d_ref[...], h.astype(mxu_dtype),
                preferred_element_type=jnp.float32) + b4d_ref[...]   # [1, TB]

    # 2-class softmax: p0 = sigmoid(l0-l1), p1 = 1 - p0 (exact).
    p0 = 1.0 / (1.0 + jnp.exp(-d))
    o_ref[0:1, :] = p0
    o_ref[1:2, :] = 1.0 - p0


def simple_model_forward(x, params, *, block_b=4096, use_bf16=True):
    """x: [N, 2] float32; params: PyTorch-layout ((out,in) weights, (out,) biases)."""
    (w1, b1), (w2, b2), (w3, b3), (w4, b4) = params
    n = x.shape[0]

    # Lane-aligned padded batch.  Keep >=2 blocks when the batch allows so the
    # "parallel" grid axis can shard across v7x's two TensorCores, but use big
    # blocks (up to block_b) to amortize per-step pipeline overhead.
    n_ceil = pl.cdiv(max(n, 1), 128) * 128
    if n_ceil >= 256:
        tb = min(block_b, max(128, ((n_ceil // 2) // 128) * 128))
    else:
        tb = n_ceil
    n_pad = pl.cdiv(n, tb) * tb

    mxu_dtype = jnp.bfloat16 if use_bf16 else jnp.float32

    # Pad features 2 -> 8 (tile-aligned sublanes; lets layer 1 run on the MXU),
    # pad batch, and put batch on the lane (last) axis.
    x_t = jnp.pad(x.astype(jnp.float32), ((0, n_pad - n), (0, 6))).T   # [8, n_pad]

    w1_pad = jnp.pad(w1.astype(jnp.float32), ((0, 0), (0, 6)))         # [128, 8]

    # Layer-4 fold: 2-class softmax only depends on the logit difference.
    w4d = (w4[0:1, :] - w4[1:2, :]).astype(jnp.float32)                # [1, 16]
    b4d = (b4[0] - b4[1]).reshape(1, 1).astype(jnp.float32)            # [1, 1]

    weight_ops = [
        w1_pad.astype(mxu_dtype), b1.reshape(-1, 1).astype(jnp.float32),
        w2.astype(mxu_dtype),     b2.reshape(-1, 1).astype(jnp.float32),
        w3.astype(mxu_dtype),     b3.reshape(-1, 1).astype(jnp.float32),
        w4d.astype(mxu_dtype),    b4d,
    ]
    # Full-array blocks + constant index_map -> VMEM-resident across the grid.
    weight_specs = [pl.BlockSpec(op.shape, lambda i: (0, 0)) for op in weight_ops]

    kernel = functools.partial(mlp_softmax_kernel, mxu_dtype=mxu_dtype)

    out_t = pl.pallas_call(
        kernel,
        out_shape=jax.ShapeDtypeStruct((2, n_pad), jnp.float32),
        grid=(n_pad // tb,),
        in_specs=[pl.BlockSpec((8, tb), lambda i: (0, i))] + weight_specs,
        out_specs=pl.BlockSpec((2, tb), lambda i: (0, i)),
        compiler_params=pltpu.CompilerParams(
            dimension_semantics=("parallel",)),     # v7x: shard batch across TCs
    )(x_t, *weight_ops)

    # TODO(synk): if end-to-end HBM traffic matters, feed x as [N,2] blocks and
    # transpose in-kernel instead of the wrapper pad/.T round-trip.
    return out_t[:, :n].T                                              # [N, 2]


def init_params(key):
    """Deterministic init mimicking nn.Linear: W is (out, in), b is (out,)."""
    dims = [(2, 128), (128, 64), (64, 16), (16, 2)]
    params = []
    for i, (fan_in, fan_out) in enumerate(dims):
        kw, kb = jax.random.split(jax.random.fold_in(key, i))
        bound = 1.0 / jnp.sqrt(fan_in)
        w = jax.random.uniform(kw, (fan_out, fan_in), jnp.float32, -bound, bound)
        b = jax.random.uniform(kb, (fan_out,), jnp.float32, -bound, bound)
        params.append((w, b))
    return params


def reference_forward(x, params):
    h = x
    for idx, (w, b) in enumerate(params):
        h = h @ w.T + b
        if idx < len(params) - 1:
            h = jnp.maximum(h, 0.0)
    return jax.nn.softmax(h, axis=1)


if __name__ == "__main__":
    key = jax.random.PRNGKey(0)
    kx, kp = jax.random.split(key)
    batch = 8
    x = jax.random.normal(kx, (batch, 2), jnp.float32)
    params = init_params(kp)
    ref = reference_forward(x, params)

    # Default (bf16-at-dot-boundary) path.
    out = simple_model_forward(x, params)
    jax.block_until_ready(out)
    assert out.shape == (batch, 2)
    # Rows of the softmax sum to 1 (exact by construction: p1 = 1 - p0).
    assert bool(jnp.allclose(jnp.sum(out, axis=1), 1.0, atol=1e-5))
    # Matches the f32 reference within bf16 tolerance.
    assert bool(jnp.allclose(out, ref, atol=2e-2))

    # Full-precision path matches the reference tightly.
    out_f32 = simple_model_forward(x, params, use_bf16=False)
    jax.block_until_ready(out_f32)
    assert bool(jnp.allclose(out_f32, ref, atol=1e-5, rtol=1e-5))

    print("KERNEL_OK")
</pallas_src>

<mosaic_0001>
module attributes {stable_mosaic.version = 11 : i64} {
  func.func @mlp_softmax_kernel(%arg0: i32, %arg1: memref<8x128xf32, #tpu.memory_space<vmem>>, %arg2: memref<128x8xbf16, #tpu.memory_space<vmem>>, %arg3: memref<128x1xf32, #tpu.memory_space<vmem>>, %arg4: memref<64x128xbf16, #tpu.memory_space<vmem>>, %arg5: memref<64x1xf32, #tpu.memory_space<vmem>>, %arg6: memref<16x64xbf16, #tpu.memory_space<vmem>>, %arg7: memref<16x1xf32, #tpu.memory_space<vmem>>, %arg8: memref<1x16xbf16, #tpu.memory_space<vmem>>, %arg9: memref<1x1xf32, #tpu.memory_space<vmem>>, %arg10: memref<2x128xf32, #tpu.memory_space<vmem>>) attributes {dimension_semantics = [#tpu.dimension_semantics<parallel>], iteration_bounds = array<i64: 1>, scalar_prefetch = 0 : i64, scratch_operands = 0 : i64, tpu.core_type = #tpu.core_type<tc>, window_params = [{transform_indices = @transform_0, window_bounds = array<i64: 8, 128>}, {pipeline_mode = #tpu.pipeline_mode<synchronous>, transform_indices = @transform_1, window_bounds = array<i64: 128, 8>}, {pipeline_mode = #tpu.pipeline_mode<synchronous>, transform_indices = @transform_2, window_bounds = array<i64: 128, 1>}, {pipeline_mode = #tpu.pipeline_mode<synchronous>, transform_indices = @transform_3, window_bounds = array<i64: 64, 128>}, {pipeline_mode = #tpu.pipeline_mode<synchronous>, transform_indices = @transform_4, window_bounds = array<i64: 64, 1>}, {pipeline_mode = #tpu.pipeline_mode<synchronous>, transform_indices = @transform_5, window_bounds = array<i64: 16, 64>}, {pipeline_mode = #tpu.pipeline_mode<synchronous>, transform_indices = @transform_6, window_bounds = array<i64: 16, 1>}, {pipeline_mode = #tpu.pipeline_mode<synchronous>, transform_indices = @transform_7, window_bounds = array<i64: 1, 16>}, {pipeline_mode = #tpu.pipeline_mode<synchronous>, transform_indices = @transform_8, window_bounds = array<i64: 1, 1>}, {transform_indices = @transform_9, window_bounds = array<i64: 2, 128>}]} {
    %c0 = arith.constant 0 : index
    %c0_0 = arith.constant 0 : index
    %0 = vector.load %arg1[%c0, %c0_0] : memref<8x128xf32, #tpu.memory_space<vmem>>, vector<8x128xf32>
    %1 = arith.truncf %0 : vector<8x128xf32> to vector<8x128xbf16>
    %c0_1 = arith.constant 0 : index
    %c0_2 = arith.constant 0 : index
    %2 = vector.load %arg2[%c0_1, %c0_2] : memref<128x8xbf16, #tpu.memory_space<vmem>>, vector<128x8xbf16>
    %cst = arith.constant dense<0.000000e+00> : vector<128x128xf32>
    %3 = tpu.matmul %2, %1, %cst {dimension_numbers = #tpu.dot_dimension_numbers<[1], [0], [0], [1], [0, 0, 1, 1], [], []>} : vector<128x8xbf16>, vector<8x128xbf16>, vector<128x128xf32> -> vector<128x128xf32>
    %c0_3 = arith.constant 0 : index
    %c0_4 = arith.constant 0 : index
    %4 = vector.load %arg3[%c0_3, %c0_4] : memref<128x1xf32, #tpu.memory_space<vmem>>, vector<128x1xf32>
    %5 = vector.broadcast %4 : vector<128x1xf32> to vector<128x128xf32>
    %6 = arith.addf %3, %5 : vector<128x128xf32>
    %cst_5 = arith.constant 0.000000e+00 : f32
    %7 = vector.broadcast %cst_5 : f32 to vector<128x128xf32>
    %8 = arith.maximumf %6, %7 : vector<128x128xf32>
    %c0_6 = arith.constant 0 : index
    %c0_7 = arith.constant 0 : index
    %9 = vector.load %arg4[%c0_6, %c0_7] : memref<64x128xbf16, #tpu.memory_space<vmem>>, vector<64x128xbf16>
    %10 = arith.truncf %8 : vector<128x128xf32> to vector<128x128xbf16>
    %cst_8 = arith.constant dense<0.000000e+00> : vector<64x128xf32>
    %11 = tpu.matmul %9, %10, %cst_8 {dimension_numbers = #tpu.dot_dimension_numbers<[1], [0], [0], [1], [0, 0, 1, 1], [], []>} : vector<64x128xbf16>, vector<128x128xbf16>, vector<64x128xf32> -> vector<64x128xf32>
    %c0_9 = arith.constant 0 : index
    %c0_10 = arith.constant 0 : index
    %12 = vector.load %arg5[%c0_9, %c0_10] : memref<64x1xf32, #tpu.memory_space<vmem>>, vector<64x1xf32>
    %13 = vector.broadcast %12 : vector<64x1xf32> to vector<64x128xf32>
    %14 = arith.addf %11, %13 : vector<64x128xf32>
    %cst_11 = arith.constant 0.000000e+00 : f32
    %15 = vector.broadcast %cst_11 : f32 to vector<64x128xf32>
    %16 = arith.maximumf %14, %15 : vector<64x128xf32>
    %c0_12 = arith.constant 0 : index
    %c0_13 = arith.constant 0 : index
    %17 = vector.load %arg6[%c0_12, %c0_13] : memref<16x64xbf16, #tpu.memory_space<vmem>>, vector<16x64xbf16>
    %18 = arith.truncf %16 : vector<64x128xf32> to vector<64x128xbf16>
    %cst_14 = arith.constant dense<0.000000e+00> : vector<16x128xf32>
    %19 = tpu.matmul %17, %18, %cst_14 {dimension_numbers = #tpu.dot_dimension_numbers<[1], [0], [0], [1], [0, 0, 1, 1], [], []>} : vector<16x64xbf16>, vector<64x128xbf16>, vector<16x128xf32> -> vector<16x128xf32>
    %c0_15 = arith.constant 0 : index
    %c0_16 = arith.constant 0 : index
    %20 = vector.load %arg7[%c0_15, %c0_16] : memref<16x1xf32, #tpu.memory_space<vmem>>, vector<16x1xf32>
    %21 = vector.broadcast %20 : vector<16x1xf32> to vector<16x128xf32>
    %22 = arith.addf %19, %21 : vector<16x128xf32>
    %cst_17 = arith.constant 0.000000e+00 : f32
    %23 = vector.broadcast %cst_17 : f32 to vector<16x128xf32>
    %24 = arith.maximumf %22, %23 : vector<16x128xf32>
    %c0_18 = arith.constant 0 : index
    %c0_19 = arith.constant 0 : index
    %25 = vector.load %arg8[%c0_18, %c0_19] : memref<1x16xbf16, #tpu.memory_space<vmem>>, vector<1x16xbf16>
    %26 = arith.truncf %24 : vector<16x128xf32> to vector<16x128xbf16>
    %cst_20 = arith.constant dense<0.000000e+00> : vector<1x128xf32>
    %27 = tpu.matmul %25, %26, %cst_20 {dimension_numbers = #tpu.dot_dimension_numbers<[1], [0], [0], [1], [0, 0, 1, 1], [], []>} : vector<1x16xbf16>, vector<16x128xbf16>, vector<1x128xf32> -> vector<1x128xf32>
    %c0_21 = arith.constant 0 : index
    %c0_22 = arith.constant 0 : index
    %28 = vector.load %arg9[%c0_21, %c0_22] : memref<1x1xf32, #tpu.memory_space<vmem>>, vector<1x1xf32>
    %29 = vector.broadcast %28 : vector<1x1xf32> to vector<1x128xf32>
    %30 = arith.addf %27, %29 : vector<1x128xf32>
    %cst_23 = arith.constant 0.000000e+00 : f32
    %31 = vector.broadcast %cst_23 : f32 to vector<1x128xf32>
    %32 = arith.subf %31, %30 : vector<1x128xf32>
    %33 = math.exp %32 : vector<1x128xf32>
    %cst_24 = arith.constant 1.000000e+00 : f32
    %34 = vector.broadcast %cst_24 : f32 to vector<1x128xf32>
    %35 = arith.addf %34, %33 : vector<1x128xf32>
    %cst_25 = arith.constant 1.000000e+00 : f32
    %36 = vector.broadcast %cst_25 : f32 to vector<1x128xf32>
    %37 = arith.divf %36, %35 : vector<1x128xf32>
    %c0_26 = arith.constant 0 : index
    %c0_27 = arith.constant 0 : index
    %38 = vector.load %arg10[%c0_26, %c0_27] : memref<2x128xf32, #tpu.memory_space<vmem>>, vector<1x128xf32>
    tpu.vector_store %arg10[%c0_26, %c0_27], %37 {strides = array<i32>} : memref<2x128xf32, #tpu.memory_space<vmem>>, vector<1x128xf32>,
    %cst_28 = arith.constant 1.000000e+00 : f32
    %39 = vector.broadcast %cst_28 : f32 to vector<1x128xf32>
    %40 = arith.subf %39, %37 : vector<1x128xf32>
    %c1 = arith.constant 1 : index
    %c0_29 = arith.constant 0 : index
    %41 = vector.load %arg10[%c1, %c0_29] : memref<2x128xf32, #tpu.memory_space<vmem>>, vector<1x128xf32>
    tpu.vector_store %arg10[%c1, %c0_29], %40 {strides = array<i32>} : memref<2x128xf32, #tpu.memory_space<vmem>>, vector<1x128xf32>,
    return
  }
  func.func @transform_0(%arg0: i32) -> (i32, i32) {
    %c0_i32 = arith.constant 0 : i32
    %c0_i32_0 = arith.constant 0 : i32
    return %c0_i32, %arg0 : i32, i32
  }
  func.func @transform_1(%arg0: i32) -> (i32, i32) {
    %c0_i32 = arith.constant 0 : i32
    %c0_i32_0 = arith.constant 0 : i32
    %c0_i32_1 = arith.constant 0 : i32
    return %c0_i32, %c0_i32_0 : i32, i32
  }
  func.func @transform_2(%arg0: i32) -> (i32, i32) {
    %c0_i32 = arith.constant 0 : i32
    %c0_i32_0 = arith.constant 0 : i32
    %c0_i32_1 = arith.constant 0 : i32
    return %c0_i32, %c0_i32_0 : i32, i32
  }
  func.func @transform_3(%arg0: i32) -> (i32, i32) {
    %c0_i32 = arith.constant 0 : i32
    %c0_i32_0 = arith.constant 0 : i32
    %c0_i32_1 = arith.constant 0 : i32
    return %c0_i32, %c0_i32_0 : i32, i32
  }
  func.func @transform_4(%arg0: i32) -> (i32, i32) {
    %c0_i32 = arith.constant 0 : i32
    %c0_i32_0 = arith.constant 0 : i32
    %c0_i32_1 = arith.constant 0 : i32
    return %c0_i32, %c0_i32_0 : i32, i32
  }
  func.func @transform_5(%arg0: i32) -> (i32, i32) {
    %c0_i32 = arith.constant 0 : i32
    %c0_i32_0 = arith.constant 0 : i32
    %c0_i32_1 = arith.constant 0 : i32
    return %c0_i32, %c0_i32_0 : i32, i32
  }
  func.func @transform_6(%arg0: i32) -> (i32, i32) {
    %c0_i32 = arith.constant 0 : i32
    %c0_i32_0 = arith.constant 0 : i32
    %c0_i32_1 = arith.constant 0 : i32
    return %c0_i32, %c0_i32_0 : i32, i32
  }
  func.func @transform_7(%arg0: i32) -> (i32, i32) {
    %c0_i32 = arith.constant 0 : i32
    %c0_i32_0 = arith.constant 0 : i32
    %c0_i32_1 = arith.constant 0 : i32
    return %c0_i32, %c0_i32_0 : i32, i32
  }
  func.func @transform_8(%arg0: i32) -> (i32, i32) {
    %c0_i32 = arith.constant 0 : i32
    %c0_i32_0 = arith.constant 0 : i32
    %c0_i32_1 = arith.constant 0 : i32
    return %c0_i32, %c0_i32_0 : i32, i32
  }
  func.func @transform_9(%arg0: i32) -> (i32, i32) {
    %c0_i32 = arith.constant 0 : i32
    %c0_i32_0 = arith.constant 0 : i32
    return %c0_i32, %arg0 : i32, i32
  }
}

</mosaic_0001>

<llo_original>
// kernel: tpu_custom_call.1
$region0: #{tpu_custom_call.1}
  #allocation0 [shape = 'u32[]', space=smem, size = 0x4, offset = 0x4, fixed_abs, tag = 'smem constant byte address 0x4 - core index']
  #allocation1 [shape = 'u32[144,128]{1,0:T(1,128)}', space=vmem, size = 0x12000, scoped, tag = 'internal scratch']
  #allocation2 [shape = 'f32[1,1]{1,0:T(1,128)S(1)}', space=vmem, size = 0x200, scoped, tag = 'scoped memory for tpu_custom_call.1']
  %s0 = inlined_call_operand.vmem [shape: f32[8,128], index: 0, kind: input, shape index: {}]
  %s1 = inlined_call_operand.vmem [shape: bf16[128,8], index: 1, kind: input, shape index: {}]
  %s2 = inlined_call_operand.vmem [shape: f32[128,1], index: 2, kind: input, shape index: {}]
  %s3 = inlined_call_operand.vmem [shape: bf16[64,128], index: 3, kind: input, shape index: {}]
  %s4 = inlined_call_operand.vmem [shape: f32[64,1], index: 4, kind: input, shape index: {}]
  %s5 = inlined_call_operand.vmem [shape: bf16[16,64], index: 5, kind: input, shape index: {}]
  %s6 = inlined_call_operand.vmem [shape: f32[16,1], index: 6, kind: input, shape index: {}]
  %s7 = inlined_call_operand.vmem [shape: bf16[1,16], index: 7, kind: input, shape index: {}]
  %s8 = inlined_call_operand.<no memory space> [shape: f32[1,1], index: 8, kind: input, shape index: {}]
  %s9 = inlined_call_operand.hbm [shape: f32[2,128], index: 9, kind: output, shape index: {}]
  %s10 = sld [smem:[#allocation0]]
  $region46: #{tpu_custom_call.1} parent=0
    _
  %s12 = ssub.s32 1, %s10
  %s13 = scalar_select 0, %s12, %s10
  %v14 = vstv %s8
  %15 = vst [vmem:[#allocation2] sm:$0x1] %v14
  $region1: #{tpu_custom_call.1} parent=0
    #allocation3 [shape = 'u8[1024]{0}', space=vmem, size = 0x400, scoped, tag = 'output window, operand 0, single buffered']
    #allocation4 [shape = 's32[1]{0}', space=sflag, size = 0x4, scoped, tag = 'scoped memory for tpu_custom_call.1']
    %16 = vsyncpa [#allocation4], 0
    // Predicated region
    $region2: #{tpu_custom_call.1} parent=1 // pred_check
      _
    $region3: #{tpu_custom_call.1} parent=1 // pred_check_branch
      %18 = sbr.rel (0) target = $region5
    $region4: #{tpu_custom_call.1} parent=1 // pred_region
      _
    $region5: #{tpu_custom_call.1} parent=1 // pred_fallthru
      _
    // Predicated region
    $region6: #{tpu_custom_call.1} parent=1 // pred_check
      _
    $region7: #{tpu_custom_call.1} parent=1 // pred_check_branch
      %20 = sbr.rel (0) target = $region9
    $region8: #{tpu_custom_call.1} parent=1 // pred_region
      _
    $region9: #{tpu_custom_call.1} parent=1 // pred_fallthru
      _
    // Predicated region
    $region10: #{tpu_custom_call.1} parent=1 // pred_check
      _
    $region11: #{tpu_custom_call.1} parent=1 // pred_check_branch
      %22 = sbr.rel (0) target = $region13
    $region12: #{tpu_custom_call.1} parent=1 // pred_region
      _
    $region13: #{tpu_custom_call.1} parent=1 // pred_fallthru
      _
    // Predicated region
    $region14: #{tpu_custom_call.1} parent=1 // pred_check
      _
    $region15: #{tpu_custom_call.1} parent=1 // pred_check_branch
      %24 = sbr.rel (0) target = $region17
    $region16: #{tpu_custom_call.1} parent=1 // pred_region
      _
    $region17: #{tpu_custom_call.1} parent=1 // pred_fallthru
      _
    // Predicated region
    $region18: #{tpu_custom_call.1} parent=1 // pred_check
      _
    $region19: #{tpu_custom_call.1} parent=1 // pred_check_branch
      %26 = sbr.rel (0) target = $region21
    $region20: #{tpu_custom_call.1} parent=1 // pred_region
      _
    $region21: #{tpu_custom_call.1} parent=1 // pred_fallthru
      _
    // Predicated region
    $region22: #{tpu_custom_call.1} parent=1 // pred_check
      _
    $region23: #{tpu_custom_call.1} parent=1 // pred_check_branch
      %28 = sbr.rel (0) target = $region25
    $region24: #{tpu_custom_call.1} parent=1 // pred_region
      _
    $region25: #{tpu_custom_call.1} parent=1 // pred_fallthru
      _
    // Predicated region
    $region26: #{tpu_custom_call.1} parent=1 // pred_check
      _
    $region27: #{tpu_custom_call.1} parent=1 // pred_check_branch
      %30 = sbr.rel (0) target = $region29
    $region28: #{tpu_custom_call.1} parent=1 // pred_region
      _
    $region29: #{tpu_custom_call.1} parent=1 // pred_fallthru
      _
    // Predicated region
    $region30: #{tpu_custom_call.1} parent=1 // pred_check
      _
    $region31: #{tpu_custom_call.1} parent=1 // pred_check_branch
      %32 = sbr.rel (0) target = $region33
    $region32: #{tpu_custom_call.1} parent=1 // pred_region
      _
    $region33: #{tpu_custom_call.1} parent=1 // pred_fallthru
      _
    // Predicated region
    $region34: #{tpu_custom_call.1} parent=1 // pred_check
      _
    $region35: #{tpu_custom_call.1} parent=1 // pred_check_branch
      %34 = sbr.rel (0) target = $region37
    $region36: #{tpu_custom_call.1} parent=1 // pred_region
      _
    $region37: #{tpu_custom_call.1} parent=1 // pred_fallthru
      _
    %v36 = vld [vmem:[%s0] sm:$0xff]
    %v37 = vpack.c.bf16 %v36, %v36
    %v38 = vld [vmem:[%s1] sm:$0xf]
    %v39 = vld [vmem:[%s1 + $0x4] sm:$0xf]
    %v40 = vld [vmem:[%s1 + $0x8] sm:$0xf]
    %v41 = vld [vmem:[%s1 + $0xc] sm:$0xf]
    %v42 = vld [vmem:[%s1 + $0x10] sm:$0xf]
    %v43 = vld [vmem:[%s1 + $0x14] sm:$0xf]
    %v44 = vld [vmem:[%s1 + $0x18] sm:$0xf]
    %v45 = vld [vmem:[%s1 + $0x1c] sm:$0xf]
    %v46 = vld [vmem:[%s1 + $0x20] sm:$0xf]
    %v47 = vld [vmem:[%s1 + $0x24] sm:$0xf]
    %v48 = vld [vmem:[%s1 + $0x28] sm:$0xf]
    %v49 = vld [vmem:[%s1 + $0x2c] sm:$0xf]
    %v50 = vld [vmem:[%s1 + $0x30] sm:$0xf]
    %v51 = vld [vmem:[%s1 + $0x34] sm:$0xf]
    %v52 = vld [vmem:[%s1 + $0x38] sm:$0xf]
    %v53 = vld [vmem:[%s1 + $0x3c] sm:$0xf]
    %v54 = vld [vmem:[%s2] sm:$0xff]
    %v55 = vld [vmem:[%s2 + $0x8] sm:$0xff]
    %v56 = vld [vmem:[%s2 + $0x10] sm:$0xff]
    %v57 = vld [vmem:[%s2 + $0x18] sm:$0xff]
    %v58 = vld [vmem:[%s2 + $0x20] sm:$0xff]
    %v59 = vld [vmem:[%s2 + $0x28] sm:$0xff]
    %v60 = vld [vmem:[%s2 + $0x30] sm:$0xff]
    %v61 = vld [vmem:[%s2 + $0x38] sm:$0xff]
    %v62 = vld [vmem:[%s2 + $0x40] sm:$0xff]
    %v63 = vld [vmem:[%s2 + $0x48] sm:$0xff]
    %v64 = vld [vmem:[%s2 + $0x50] sm:$0xff]
    %v65 = vld [vmem:[%s2 + $0x58] sm:$0xff]
    %v66 = vld [vmem:[%s2 + $0x60] sm:$0xff]
    %v67 = vld [vmem:[%s2 + $0x68] sm:$0xff]
    %v68 = vld [vmem:[%s2 + $0x70] sm:$0xff]
    %v69 = vld [vmem:[%s2 + $0x78] sm:$0xff]
    %71 = vset.pattern.permute.xlu0 0
    %72 = vperm.xlu0 %71, %v54
    %v73 = vpop.permute.xlu0 %72
    %76 = vset.pattern.permute.xlu0 0
    %77 = vperm.xlu0 %76, %v55
    %v78 = vpop.permute.xlu0 %77
    %81 = vset.pattern.permute.xlu0 0
    %82 = vperm.xlu0 %81, %v56
    %v83 = vpop.permute.xlu0 %82
    %86 = vset.pattern.permute.xlu0 0
    %87 = vperm.xlu0 %86, %v57
    %v88 = vpop.permute.xlu0 %87
    %91 = vset.pattern.permute.xlu0 0
    %92 = vperm.xlu0 %91, %v58
    %v93 = vpop.permute.xlu0 %92
    %96 = vset.pattern.permute.xlu0 0
    %97 = vperm.xlu0 %96, %v59
    %v98 = vpop.permute.xlu0 %97
    %101 = vset.pattern.permute.xlu0 0
    %102 = vperm.xlu0 %101, %v60
    %v103 = vpop.permute.xlu0 %102
    %106 = vset.pattern.permute.xlu0 0
    %107 = vperm.xlu0 %106, %v61
    %v108 = vpop.permute.xlu0 %107
    %111 = vset.pattern.permute.xlu0 0
    %112 = vperm.xlu0 %111, %v62
    %v113 = vpop.permute.xlu0 %112
    %116 = vset.pattern.permute.xlu0 0
    %117 = vperm.xlu0 %116, %v63
    %v118 = vpop.permute.xlu0 %117
    %121 = vset.pattern.permute.xlu0 0
    %122 = vperm.xlu0 %121, %v64
    %v123 = vpop.permute.xlu0 %122
    %126 = vset.pattern.permute.xlu0 0
    %127 = vperm.xlu0 %126, %v65
    %v128 = vpop.permute.xlu0 %127
    %131 = vset.pattern.permute.xlu0 0
    %132 = vperm.xlu0 %131, %v66
    %v133 = vpop.permute.xlu0 %132
    %136 = vset.pattern.permute.xlu0 0
    %137 = vperm.xlu0 %136, %v67
    %v138 = vpop.permute.xlu0 %137
    %141 = vset.pattern.permute.xlu0 0
    %142 = vperm.xlu0 %141, %v68
    %v143 = vpop.permute.xlu0 %142
    %146 = vset.pattern.permute.xlu0 0
    %147 = vperm.xlu0 %146, %v69
    %v148 = vpop.permute.xlu0 %147
    %v166 = vunpack.c.l.b16 %v38
    %v167 = vunpack.c.l.b16 %v39
    %v168 = vunpack.c.l.b16 %v40
    %v169 = vunpack.c.l.b16 %v41
    %v170 = vunpack.c.l.b16 %v42
    %v171 = vunpack.c.l.b16 %v43
    %v172 = vunpack.c.l.b16 %v44
    %v173 = vunpack.c.l.b16 %v45
    %v174 = vunpack.c.l.b16 %v46
    %v175 = vunpack.c.l.b16 %v47
    %v176 = vunpack.c.l.b16 %v48
    %v177 = vunpack.c.l.b16 %v49
    %v178 = vunpack.c.l.b16 %v50
    %v179 = vunpack.c.l.b16 %v51
    %v180 = vunpack.c.l.b16 %v52
    %v181 = vunpack.c.l.b16 %v53
    %v182 = vpack.c.b16 %v167, %v166
    %v183 = vpack.c.b16 %v169, %v168
    %v184 = vpack.c.b16 %v171, %v170
    %v185 = vpack.c.b16 %v173, %v172
    %v186 = vpack.c.b16 %v175, %v174
    %v187 = vpack.c.b16 %v177, %v176
    %v188 = vpack.c.b16 %v179, %v178
    %v189 = vpack.c.b16 %v181, %v180
    %vm190 = vcmask 64512
    %v192 = vsel %vm190, %v182, 0
    %v195 = vsel %vm190, %v183, 0
    %v198 = vsel %vm190, %v184, 0
    %v201 = vsel %vm190, %v185, 0
    %v204 = vsel %vm190, %v186, 0
    %v207 = vsel %vm190, %v187, 0
    %v210 = vsel %vm190, %v188, 0
    %v213 = vsel %vm190, %v189, 0
    %vm215 = vcmask 1043456
    %v217 = vsel %vm215, %v37, 0
    %219 = vmatprep.subr.bf16.mxu0 0
    %220 = vmatpush1.bf16.msra.mxu0 0
    %221 = vmatprep.subr.bf16.mxu0 0
    %222 = vmatpush1.bf16.msra.mxu0 0
    %223 = vmatprep.subr.bf16.mxu0 0
    %224 = vmatpush1.bf16.msra.mxu0 0
    %225 = vmatprep.subr.bf16.mxu0 0
    %226 = vmatpush1.bf16.msra.mxu0 0
    %227 = vmatprep.subr.bf16.mxu0 0
    %228 = vmatpush1.bf16.msra.mxu0 0
    %229 = vmatprep.subr.bf16.mxu0 0
    %230 = vmatpush1.bf16.msra.mxu0 0
    %231 = vmatprep.subr.bf16.mxu0 0
    %232 = vmatpush1.bf16.msra.mxu0 0
    %233 = vmatprep.subr.bf16.mxu0 0
    %234 = vmatpush1.bf16.msra.mxu0 %v217
    %235 = vmatprep.subr.bf16.mxu0 0
    %236 = vmatpush2.bf16.msra.mxu0 0
    %237 = vmatprep.subr.bf16.mxu0 0
    %238 = vmatpush2.bf16.msra.mxu0 0
    %239 = vmatprep.subr.bf16.mxu0 0
    %240 = vmatpush2.bf16.msra.mxu0 0
    %241 = vmatprep.subr.bf16.mxu0 0
    %242 = vmatpush2.bf16.msra.mxu0 0
    %243 = vmatprep.subr.bf16.mxu0 0
    %244 = vmatpush2.bf16.msra.mxu0 0
    %245 = vmatprep.subr.bf16.mxu0 0
    %246 = vmatpush2.bf16.msra.mxu0 0
    %247 = vmatprep.subr.bf16.mxu0 0
    %248 = vmatpush2.bf16.msra.mxu0 0
    %249 = vmatprep.subr.bf16.mxu0 0
    %250 = vmatpush2.bf16.msra.mxu0 0
    %251 = vmatprep.mubr.bf16.mxu0 0
    %252 = vmatmul.mubr.bf16.gmra.mxu0 %v192
    %v253 = vpop.f32.mrf.mxu0
    %v254 = vadd.f32 %v73, %v253
    %v255 = vpop.f32.mrf.mxu0
    %v256 = vpop.f32.mrf.mxu0
    %v257 = vadd.f32 %v78, %v256
    %v258 = vpop.f32.mrf.mxu0
    %259 = vmatprep.mubr.bf16.mxu0 0
    %260 = vmatmul.mubr.bf16.gmra.mxu0 %v195
    %v261 = vpop.f32.mrf.mxu0
    %v262 = vadd.f32 %v83, %v261
    %v263 = vpop.f32.mrf.mxu0
    %v264 = vpop.f32.mrf.mxu0
    %v265 = vadd.f32 %v88, %v264
    %v266 = vpop.f32.mrf.mxu0
    %267 = vmatprep.mubr.bf16.mxu0 0
    %268 = vmatmul.mubr.bf16.gmra.mxu0 %v198
    %v269 = vpop.f32.mrf.mxu0
    %v270 = vadd.f32 %v93, %v269
    %v271 = vpop.f32.mrf.mxu0
    %v272 = vpop.f32.mrf.mxu0
    %v273 = vadd.f32 %v98, %v272
    %v274 = vpop.f32.mrf.mxu0
    %275 = vmatprep.mubr.bf16.mxu0 0
    %276 = vmatmul.mubr.bf16.gmra.mxu0 %v201
    %v277 = vpop.f32.mrf.mxu0
    %v278 = vadd.f32 %v103, %v277
    %v279 = vpop.f32.mrf.mxu0
    %v280 = vpop.f32.mrf.mxu0
    %v281 = vadd.f32 %v108, %v280
    %v282 = vpop.f32.mrf.mxu0
    %283 = vmatprep.mubr.bf16.mxu0 0
    %284 = vmatmul.mubr.bf16.gmra.mxu0 %v204
    %v285 = vpop.f32.mrf.mxu0
    %v286 = vadd.f32 %v113, %v285
    %v287 = vpop.f32.mrf.mxu0
    %v288 = vpop.f32.mrf.mxu0
    %v289 = vadd.f32 %v118, %v288
    %v290 = vpop.f32.mrf.mxu0
    %291 = vmatprep.mubr.bf16.mxu0 0
    %292 = vmatmul.mubr.bf16.gmra.mxu0 %v207
    %v293 = vpop.f32.mrf.mxu0
    %v294 = vadd.f32 %v123, %v293
    %v295 = vpop.f32.mrf.mxu0
    %v296 = vpop.f32.mrf.mxu0
    %v297 = vadd.f32 %v128, %v296
    %v298 = vpop.f32.mrf.mxu0
    %299 = vmatprep.mubr.bf16.mxu0 0
    %300 = vmatmul.mubr.bf16.gmra.mxu0 %v210
    %v301 = vpop.f32.mrf.mxu0
    %v302 = vadd.f32 %v133, %v301
    %v303 = vpop.f32.mrf.mxu0
    %v304 = vpop.f32.mrf.mxu0
    %v305 = vadd.f32 %v138, %v304
    %v306 = vpop.f32.mrf.mxu0
    %307 = vmatprep.mubr.bf16.mxu0 0
    %308 = vmatmul.mubr.bf16.gmra.mxu0 %v213
    %v309 = vpop.f32.mrf.mxu0
    %v310 = vadd.f32 %v143, %v309
    %v311 = vpop.f32.mrf.mxu0
    %v312 = vpop.f32.mrf.mxu0
    %v313 = vadd.f32 %v148, %v312
    %v314 = vpop.f32.mrf.mxu0
    %315 = vdwg.mxu0
    %v316 = vmax.f32 %v254, 0.0
    %v317 = vmax.f32 %v257, 0.0
    %v318 = vmax.f32 %v262, 0.0
    %v319 = vmax.f32 %v265, 0.0
    %v320 = vmax.f32 %v270, 0.0
    %v321 = vmax.f32 %v273, 0.0
    %v322 = vmax.f32 %v278, 0.0
    %v323 = vmax.f32 %v281, 0.0
    %v324 = vmax.f32 %v286, 0.0
    %v325 = vmax.f32 %v289, 0.0
    %v326 = vmax.f32 %v294, 0.0
    %v327 = vmax.f32 %v297, 0.0
    %v328 = vmax.f32 %v302, 0.0
    %v329 = vmax.f32 %v305, 0.0
    %v330 = vmax.f32 %v310, 0.0
    %v331 = vmax.f32 %v313, 0.0
    %v332 = vld [vmem:[%s3] sm:$0xf]
    %v333 = vld [vmem:[%s3 + $0x4] sm:$0xf]
    %v334 = vld [vmem:[%s3 + $0x8] sm:$0xf]
    %v335 = vld [vmem:[%s3 + $0xc] sm:$0xf]
    %v336 = vld [vmem:[%s3 + $0x10] sm:$0xf]
    %v337 = vld [vmem:[%s3 + $0x14] sm:$0xf]
    %v338 = vld [vmem:[%s3 + $0x18] sm:$0xf]
    %v339 = vld [vmem:[%s3 + $0x1c] sm:$0xf]
    %v340 = vpack.c.bf16 %v317, %v316
    %v341 = vpack.c.bf16 %v319, %v318
    %v342 = vpack.c.bf16 %v321, %v320
    %v343 = vpack.c.bf16 %v323, %v322
    %v344 = vpack.c.bf16 %v325, %v324
    %v345 = vpack.c.bf16 %v327, %v326
    %v346 = vpack.c.bf16 %v329, %v328
    %v347 = vpack.c.bf16 %v331, %v330
    %v348 = vld [vmem:[%s4] sm:$0xff]
    %v349 = vld [vmem:[%s4 + $0x8] sm:$0xff]
    %v350 = vld [vmem:[%s4 + $0x10] sm:$0xff]
    %v351 = vld [vmem:[%s4 + $0x18] sm:$0xff]
    %v352 = vld [vmem:[%s4 + $0x20] sm:$0xff]
    %v353 = vld [vmem:[%s4 + $0x28] sm:$0xff]
    %v354 = vld [vmem:[%s4 + $0x30] sm:$0xff]
    %v355 = vld [vmem:[%s4 + $0x38] sm:$0xff]
    %357 = vset.pattern.permute.xlu0 0
    %358 = vperm.xlu0 %357, %v348
    %v359 = vpop.permute.xlu0 %358
    %362 = vset.pattern.permute.xlu0 0
    %363 = vperm.xlu0 %362, %v349
    %v364 = vpop.permute.xlu0 %363
    %367 = vset.pattern.permute.xlu0 0
    %368 = vperm.xlu0 %367, %v350
    %v369 = vpop.permute.xlu0 %368
    %372 = vset.pattern.permute.xlu0 0
    %373 = vperm.xlu0 %372, %v351
    %v374 = vpop.permute.xlu0 %373
    %377 = vset.pattern.permute.xlu0 0
    %378 = vperm.xlu0 %377, %v352
    %v379 = vpop.permute.xlu0 %378
    %382 = vset.pattern.permute.xlu0 0
    %383 = vperm.xlu0 %382, %v353
    %v384 = vpop.permute.xlu0 %383
    %387 = vset.pattern.permute.xlu0 0
    %388 = vperm.xlu0 %387, %v354
    %v389 = vpop.permute.xlu0 %388
    %392 = vset.pattern.permute.xlu0 0
    %393 = vperm.xlu0 %392, %v355
    %v394 = vpop.permute.xlu0 %393
    %v404 = vunpack.c.l.b16 %v332
    %v405 = vunpack.c.l.b16 %v333
    %v406 = vunpack.c.l.b16 %v334
    %v407 = vunpack.c.l.b16 %v335
    %v408 = vunpack.c.l.b16 %v336
    %v409 = vunpack.c.l.b16 %v337
    %v410 = vunpack.c.l.b16 %v338
    %v411 = vunpack.c.l.b16 %v339
    %v412 = vpack.c.b16 %v405, %v404
    %v413 = vpack.c.b16 %v407, %v406
    %v414 = vpack.c.b16 %v409, %v408
    %v415 = vpack.c.b16 %v411, %v410
    %420 = vmatprep.subr.bf16.mxu0 0
    %421 = vmatpush1.bf16.msra.mxu0 %v347
    %422 = vmatprep.subr.bf16.mxu0 0
    %423 = vmatpush1.bf16.msra.mxu0 %v346
    %424 = vmatprep.subr.bf16.mxu0 0
    %425 = vmatpush1.bf16.msra.mxu0 %v345
    %426 = vmatprep.subr.bf16.mxu0 0
    %427 = vmatpush1.bf16.msra.mxu0 %v344
    %428 = vmatprep.subr.bf16.mxu0 0
    %429 = vmatpush1.bf16.msra.mxu0 %v343
    %430 = vmatprep.subr.bf16.mxu0 0
    %431 = vmatpush1.bf16.msra.mxu0 %v342
    %432 = vmatprep.subr.bf16.mxu0 0
    %433 = vmatpush1.bf16.msra.mxu0 %v341
    %434 = vmatprep.subr.bf16.mxu0 0
    %435 = vmatpush1.bf16.msra.mxu0 %v340
    %436 = vmatprep.subr.bf16.mxu0 0
    %437 = vmatpush2.bf16.msra.mxu0 0
    %438 = vmatprep.subr.bf16.mxu0 0
    %439 = vmatpush2.bf16.msra.mxu0 0
    %440 = vmatprep.subr.bf16.mxu0 0
    %441 = vmatpush2.bf16.msra.mxu0 0
    %442 = vmatprep.subr.bf16.mxu0 0
    %443 = vmatpush2.bf16.msra.mxu0 0
    %444 = vmatprep.subr.bf16.mxu0 0
    %445 = vmatpush2.bf16.msra.mxu0 0
    %446 = vmatprep.subr.bf16.mxu0 0
    %447 = vmatpush2.bf16.msra.mxu0 0
    %448 = vmatprep.subr.bf16.mxu0 0
    %449 = vmatpush2.bf16.msra.mxu0 0
    %450 = vmatprep.subr.bf16.mxu0 0
    %451 = vmatpush2.bf16.msra.mxu0 0
    %452 = vmatprep.mubr.bf16.mxu0 0
    %453 = vmatmul.mubr.bf16.gmra.mxu0 %v412
    %v454 = vpop.f32.mrf.mxu0
    %v455 = vadd.f32 %v359, %v454
    %v456 = vpop.f32.mrf.mxu0
    %v457 = vpop.f32.mrf.mxu0
    %v458 = vadd.f32 %v364, %v457
    %v459 = vpop.f32.mrf.mxu0
    %460 = vmatprep.mubr.bf16.mxu0 0
    %461 = vmatmul.mubr.bf16.gmra.mxu0 %v413
    %v462 = vpop.f32.mrf.mxu0
    %v463 = vadd.f32 %v369, %v462
    %v464 = vpop.f32.mrf.mxu0
    %v465 = vpop.f32.mrf.mxu0
    %v466 = vadd.f32 %v374, %v465
    %v467 = vpop.f32.mrf.mxu0
    %468 = vmatprep.mubr.bf16.mxu0 0
    %469 = vmatmul.mubr.bf16.gmra.mxu0 %v414
    %v470 = vpop.f32.mrf.mxu0
    %v471 = vadd.f32 %v379, %v470
    %v472 = vpop.f32.mrf.mxu0
    %v473 = vpop.f32.mrf.mxu0
    %v474 = vadd.f32 %v384, %v473
    %v475 = vpop.f32.mrf.mxu0
    %476 = vmatprep.mubr.bf16.mxu0 0
    %477 = vmatmul.mubr.bf16.gmra.mxu0 %v415
    %v478 = vpop.f32.mrf.mxu0
    %v479 = vadd.f32 %v389, %v478
    %v480 = vpop.f32.mrf.mxu0
    %v481 = vpop.f32.mrf.mxu0
    %v482 = vadd.f32 %v394, %v481
    %v483 = vpop.f32.mrf.mxu0
    %484 = vdwg.mxu0
    %v485 = vmax.f32 %v455, 0.0
    %v486 = vmax.f32 %v458, 0.0
    %v487 = vmax.f32 %v463, 0.0
    %v488 = vmax.f32 %v466, 0.0
    %v489 = vmax.f32 %v471, 0.0
    %v490 = vmax.f32 %v474, 0.0
    %v491 = vmax.f32 %v479, 0.0
    %v492 = vmax.f32 %v482, 0.0
    %v493 = vld [vmem:[%s5] sm:$0xf]
    %v494 = vld [vmem:[%s5 + $0x4] sm:$0xf]
    %v495 = vpack.c.bf16 %v486, %v485
    %v496 = vpack.c.bf16 %v488, %v487
    %v497 = vpack.c.bf16 %v490, %v489
    %v498 = vpack.c.bf16 %v492, %v491
    %v499 = vld [vmem:[%s6] sm:$0xff]
    %v500 = vld [vmem:[%s6 + $0x8] sm:$0xff]
    %502 = vset.pattern.permute.xlu0 0
    %503 = vperm.xlu0 %502, %v499
    %v504 = vpop.permute.xlu0 %503
    %507 = vset.pattern.permute.xlu0 0
    %508 = vperm.xlu0 %507, %v500
    %v509 = vpop.permute.xlu0 %508
    %v513 = vunpack.c.l.b16 %v493
    %v514 = vunpack.c.l.b16 %v494
    %v515 = vpack.c.b16 %v514, %v513
    %vm516 = vcmask 523264
    %v518 = vsel %vm516, %v515, 0
    %520 = vmatprep.subr.bf16.mxu0 0
    %521 = vmatpush1.bf16.msra.mxu0 0
    %522 = vmatprep.subr.bf16.mxu0 0
    %523 = vmatpush1.bf16.msra.mxu0 0
    %524 = vmatprep.subr.bf16.mxu0 0
    %525 = vmatpush1.bf16.msra.mxu0 0
    %526 = vmatprep.subr.bf16.mxu0 0
    %527 = vmatpush1.bf16.msra.mxu0 0
    %528 = vmatprep.subr.bf16.mxu0 0
    %529 = vmatpush1.bf16.msra.mxu0 %v498
    %530 = vmatprep.subr.bf16.mxu0 0
    %531 = vmatpush1.bf16.msra.mxu0 %v497
    %532 = vmatprep.subr.bf16.mxu0 0
    %533 = vmatpush1.bf16.msra.mxu0 %v496
    %534 = vmatprep.subr.bf16.mxu0 0
    %535 = vmatpush1.bf16.msra.mxu0 %v495
    %536 = vmatprep.subr.bf16.mxu0 0
    %537 = vmatpush2.bf16.msra.mxu0 0
    %538 = vmatprep.subr.bf16.mxu0 0
    %539 = vmatpush2.bf16.msra.mxu0 0
    %540 = vmatprep.subr.bf16.mxu0 0
    %541 = vmatpush2.bf16.msra.mxu0 0
    %542 = vmatprep.subr.bf16.mxu0 0
    %543 = vmatpush2.bf16.msra.mxu0 0
    %544 = vmatprep.subr.bf16.mxu0 0
    %545 = vmatpush2.bf16.msra.mxu0 0
    %546 = vmatprep.subr.bf16.mxu0 0
    %547 = vmatpush2.bf16.msra.mxu0 0
    %548 = vmatprep.subr.bf16.mxu0 0
    %549 = vmatpush2.bf16.msra.mxu0 0
    %550 = vmatprep.subr.bf16.mxu0 0
    %551 = vmatpush2.bf16.msra.mxu0 0
    %552 = vmatprep.mubr.bf16.mxu0 0
    %553 = vmatmul.mubr.bf16.gmra.mxu0 %v518
    %v554 = vpop.f32.mrf.mxu0
    %v555 = vadd.f32 %v504, %v554
    %v556 = vpop.f32.mrf.mxu0
    %v557 = vpop.f32.mrf.mxu0
    %v558 = vadd.f32 %v509, %v557
    %v559 = vpop.f32.mrf.mxu0
    %560 = vdwg.mxu0
    %v561 = vmax.f32 %v555, 0.0
    %v562 = vmax.f32 %v558, 0.0
    %v563 = vld [vmem:[%s7] sm:$0x1]
    %v564 = vpack.c.bf16 %v562, %v561
    %v565 = vld [vmem:[#allocation2] sm:$0x1]
    %567 = vset.pattern.permute.xlu0 0
    %568 = vperm.xlu0 %567, %v565
    %v569 = vpop.permute.xlu0 %568
    %v571 = vlaneseq
    %v572 = vshrl.u32 %v571, 7
    %v573 = vsub.s32 0, %v572
    %v574 = vrot.slane %v569, %v573
    %vm575 = vcmask 130048
    %v577 = vsel %vm575, %v563, 0
    %579 = vmatprep.subr.bf16.mxu0 0
    %580 = vmatpush1.bf16.msra.mxu0 0
    %581 = vmatprep.subr.bf16.mxu0 0
    %582 = vmatpush1.bf16.msra.mxu0 0
    %583 = vmatprep.subr.bf16.mxu0 0
    %584 = vmatpush1.bf16.msra.mxu0 0
    %585 = vmatprep.subr.bf16.mxu0 0
    %586 = vmatpush1.bf16.msra.mxu0 0
    %587 = vmatprep.subr.bf16.mxu0 0
    %588 = vmatpush1.bf16.msra.mxu0 0
    %589 = vmatprep.subr.bf16.mxu0 0
    %590 = vmatpush1.bf16.msra.mxu0 0
    %591 = vmatprep.subr.bf16.mxu0 0
    %592 = vmatpush1.bf16.msra.mxu0 0
    %593 = vmatprep.subr.bf16.mxu0 0
    %594 = vmatpush1.bf16.msra.mxu0 %v564
    %595 = vmatprep.subr.bf16.mxu0 0
    %596 = vmatpush2.bf16.msra.mxu0 0
    %597 = vmatprep.subr.bf16.mxu0 0
    %598 = vmatpush2.bf16.msra.mxu0 0
    %599 = vmatprep.subr.bf16.mxu0 0
    %600 = vmatpush2.bf16.msra.mxu0 0
    %601 = vmatprep.subr.bf16.mxu0 0
    %602 = vmatpush2.bf16.msra.mxu0 0
    %603 = vmatprep.subr.bf16.mxu0 0
    %604 = vmatpush2.bf16.msra.mxu0 0
    %605 = vmatprep.subr.bf16.mxu0 0
    %606 = vmatpush2.bf16.msra.mxu0 0
    %607 = vmatprep.subr.bf16.mxu0 0
    %608 = vmatpush2.bf16.msra.mxu0 0
    %609 = vmatprep.subr.bf16.mxu0 0
    %610 = vmatpush2.bf16.msra.mxu0 0
    %611 = vmatprep.mubr.bf16.mxu0 0
    %612 = vmatmul.mubr.bf16.gmra.mxu0 %v577
    %v613 = vpop.f32.mrf.mxu0
    %v614 = vadd.f32 %v574, %v613
    %v615 = vpop.f32.mrf.mxu0
    %v616 = vpop.f32.mrf.mxu0
    %v617 = vpop.f32.mrf.mxu0
    %618 = vdwg.mxu0
    %v619 = vsub.f32 0.0, %v614
    %v620 = vmul.f32 %v619, 1.442695
    %v621 = vpow.pop %v620
    %v622 = vadd.f32 %v621, 1.0
    %v623 = vrcp.pop %v622
    %v624 = vmul.f32 1.0, %v623
    %625 = vst [vmem:[#allocation3] sm:$0x1] %v624
    %v626 = vsub.f32 1.0, %v624
    %627 = vst [vmem:[#allocation3 + $0x1] sm:$0x1] %v626
    // Predicated region
    $region38: #{tpu_custom_call.1} parent=1 // pred_check
      _
    $region39: #{tpu_custom_call.1} parent=1 // pred_check_branch
      %629 = sbr.rel (0) target = $region41
    $region40: #{tpu_custom_call.1} parent=1 // pred_region
      %s631 = ssub.s32 32, 32
      %632 = vsyncadd [#allocation4], %s631
      %s634 = sshll.u32 [#allocation3], 4
      %s635 = int_to_ptr.vmem [resolvable:$true] %s634
      %637 = dma.vmem_to_hbm [thread:$0]  %s635, 32, %s9, [#allocation4]
    $region41: #{tpu_custom_call.1} parent=1 // pred_fallthru
      _
    // Predicated region
    $region42: #{tpu_custom_call.1} parent=1 // pred_check
      _
    $region43: #{tpu_custom_call.1} parent=1 // pred_check_branch
      %639 = sbr.rel (0) target = $region45
    $region44: #{tpu_custom_call.1} parent=1 // pred_region
      %640 = dma.done [#allocation4], 32
    $region45: #{tpu_custom_call.1} parent=1 // pred_fallthru
      _
    %641 = vsyncpa [#allocation4], 1

</llo_original>
